<compile_context>
chip_gen: v7x
topology: tpu7x:2x2x1
jax: 0.10.0
libtpu: 0.0.40
codegen_flags: <defaults>
</compile_context>

<pallas_src>
import functools

import jax
import jax.numpy as jnp
import numpy as np
from jax.experimental import pallas as pl
from jax.experimental.pallas import tpu as pltpu


# ------------------------- host-side factored mask precompute -------------------------
def _border_mask(img_h, img_w):
    """(4, H*W) f32 border mask, one row per shifted direction (identity needs none).

    dir 0: left  (reads x[i, j+1]) -> zero at col == W-1
    dir 1: right (reads x[i, j-1]) -> zero at col == 0
    dir 2: up    (reads x[i+1, j]) -> zero at row == H-1
    dir 3: down  (reads x[i-1, j]) -> zero at row == 0
    """
    hw = img_h * img_w
    col = np.arange(hw, dtype=np.int64) % img_w
    row = np.arange(hw, dtype=np.int64) // img_w
    border = np.stack([
        col != img_w - 1,
        col != 0,
        row != img_h - 1,
        row != 0,
    ]).astype(np.float32)
    return jnp.asarray(border)                      # (4, HW)


def _group_onehot(ch):
    """(ch, 5) f32: column d is the indicator of channel-group d (ch//5 channels each)."""
    cg = ch // 5
    grp = np.arange(ch) // cg
    return jnp.asarray((grp[:, None] == np.arange(5)[None, :]).astype(np.float32))


# --------------------------------------- kernel ---------------------------------------
def _shift(t, border, onehot, img_w):
    """ELAN '+' shift: 4 XLU lane rolls + factored (border x channel-group) masks."""
    L = t.shape[-1]
    return (pltpu.roll(t, L - 1, axis=1) * border[0:1, :] * onehot[:, 0:1]        # x[i, j+1]
            + pltpu.roll(t, 1, axis=1) * border[1:2, :] * onehot[:, 1:2]          # x[i, j-1]
            + pltpu.roll(t, L - img_w, axis=1) * border[2:3, :] * onehot[:, 2:3]  # x[i+1, j]
            + pltpu.roll(t, img_w, axis=1) * border[3:4, :] * onehot[:, 3:4]      # x[i-1, j]
            + t * onehot[:, 4:5])                                                 # identity


def _lfe_kernel(x_ref, w1_ref, b1_ref, w2_ref, b2_ref, border_ref, oh1_ref, oh2_ref,
                o_ref, *, img_w):
    x = x_ref[...]                                          # (C, HW) f32, one image
    border = border_ref[...]                                # (4, HW) f32
    xs = _shift(x, border, oh1_ref[...], img_w)
    h = jnp.dot(w1_ref[...], xs.astype(jnp.bfloat16),
                preferred_element_type=jnp.float32) + b1_ref[...]
    h = jnp.maximum(h, 0.0)                                 # ReLU
    hs = _shift(h, border, oh2_ref[...], img_w)
    y = jnp.dot(w2_ref[...], hs.astype(jnp.bfloat16),
                preferred_element_type=jnp.float32) + b2_ref[...]
    o_ref[...] = y.astype(o_ref.dtype)


# -------------------------------------- wrapper ---------------------------------------
def lfe_pallas(x_nchw, w1, b1, w2, b2):
    """x_nchw: (N, C, H, W) f32.  w1: (Chid, C), b1: (Chid,), w2: (C, Chid), b2: (C,)."""
    N, C, H, W = x_nchw.shape
    Chid = w1.shape[0]
    assert C % 5 == 0 and C >= 5, "ShiftConv2d1x1 requires in_channels % 5 == 0"
    assert Chid % 5 == 0 and Chid >= 5, "ShiftConv2d1x1 requires in_channels % 5 == 0"
    HW = H * W

    # Free reshape (no transpose): (N, C, H, W) -> (N, C, HW).  One image per grid step.
    x_ncl = x_nchw.reshape(N, C, HW)

    # bf16 MXU operands; f32 accumulation inside the kernel.
    w1_b = w1.astype(jnp.bfloat16)
    w2_b = w2.astype(jnp.bfloat16)
    b1_c = b1.reshape(Chid, 1).astype(jnp.float32)
    b2_c = b2.reshape(C, 1).astype(jnp.float32)

    border = _border_mask(H, W)                   # (4, HW)     -- shared by both shifts
    oh1 = _group_onehot(C)                        # (C, 5)
    oh2 = _group_onehot(Chid)                     # (Chid, 5)

    # Honest per-step VMEM estimate: double-buffered x/out/border blocks + in-kernel
    # intermediates (xs, h, hs f32 and bf16 MXU-operand copies) + weights/bias slack.
    est_vmem = (2 * (C * HW * 4 + C * HW * 4 + 4 * HW * 4)       # x, out, border (x2 bufs)
                + (C + 2 * Chid) * HW * 4                        # xs, h, hs (f32)
                + (C + Chid) * HW * 2                            # bf16 copies
                + (1 << 20))                                     # weights/biases/slack
    compiler_kwargs = dict(dimension_semantics=("parallel",))
    if est_vmem > 12 * 1024 * 1024:       # v5e default scoped VMEM is 16 MiB -> raise early
        try:
            vmem_cap = int(pltpu.get_tpu_info().vmem_capacity_bytes)
        except Exception:
            vmem_cap = 64 * 1024 * 1024   # v7x floor: never request beyond physical VMEM
        compiler_kwargs["vmem_limit_bytes"] = int(
            min(max(est_vmem * 3 // 2, 16 * 1024 * 1024), vmem_cap * 85 // 100))

    out = pl.pallas_call(
        functools.partial(_lfe_kernel, img_w=W),
        out_shape=jax.ShapeDtypeStruct((N, C, HW), jnp.float32),
        grid=(N,),
        in_specs=[
            pl.BlockSpec((None, C, HW), lambda n: (n, 0, 0)),   # x: one image per step
            pl.BlockSpec((Chid, C), lambda n: (0, 0)),          # w1 (bf16)
            pl.BlockSpec((Chid, 1), lambda n: (0, 0)),          # b1
            pl.BlockSpec((C, Chid), lambda n: (0, 0)),          # w2 (bf16)
            pl.BlockSpec((C, 1), lambda n: (0, 0)),             # b2
            pl.BlockSpec((4, HW), lambda n: (0, 0)),            # factored border mask
            pl.BlockSpec((C, 5), lambda n: (0, 0)),             # channel-group one-hot (in)
            pl.BlockSpec((Chid, 5), lambda n: (0, 0)),          # channel-group one-hot (hid)
        ],
        out_specs=pl.BlockSpec((None, C, HW), lambda n: (n, 0, 0)),
        compiler_params=pltpu.CompilerParams(**compiler_kwargs),
    )(x_ncl, w1_b, b1_c, w2_b, b2_c, border, oh1, oh2)

    return out.reshape(N, C, H, W)


# ---------------- pure-JAX reference (NCHW, matches PyTorch semantics) ----------------
def _shift_ref(x):
    N, C, H, W = x.shape
    cg = C // 5
    out = jnp.zeros_like(x)
    out = out.at[:, 0 * cg:1 * cg, :, :-1].set(x[:, 0 * cg:1 * cg, :, 1:])   # left
    out = out.at[:, 1 * cg:2 * cg, :, 1:].set(x[:, 1 * cg:2 * cg, :, :-1])   # right
    out = out.at[:, 2 * cg:3 * cg, :-1, :].set(x[:, 2 * cg:3 * cg, 1:, :])   # up
    out = out.at[:, 3 * cg:4 * cg, 1:, :].set(x[:, 3 * cg:4 * cg, :-1, :])   # down
    out = out.at[:, 4 * cg:, :, :].set(x[:, 4 * cg:, :, :])                  # identity
    return out


def lfe_ref(x, w1, b1, w2, b2):
    hp = jax.lax.Precision.HIGHEST
    xs = _shift_ref(x)
    h = jnp.einsum('oi,nihw->nohw', w1, xs, precision=hp) + b1[None, :, None, None]
    h = jnp.maximum(h, 0.0)
    hs = _shift_ref(h)
    y = jnp.einsum('oi,nihw->nohw', w2, hs, precision=hp) + b2[None, :, None, None]
    return y


if __name__ == "__main__":
    # planes must be divisible by 5 (ShiftConv2d1x1 requirement)
    planes, r_expand = 10, 2
    hidden = planes * r_expand
    N, H, W = 2, 16, 16

    key = jax.random.PRNGKey(0)
    kx, k1, k2, k3, k4 = jax.random.split(key, 5)
    x = jax.random.normal(kx, (N, planes, H, W), dtype=jnp.float32)
    w1 = 0.1 * jax.random.normal(k1, (hidden, planes), dtype=jnp.float32)
    b1 = 0.1 * jax.random.normal(k2, (hidden,), dtype=jnp.float32)
    w2 = 0.1 * jax.random.normal(k3, (planes, hidden), dtype=jnp.float32)
    b2 = 0.1 * jax.random.normal(k4, (planes,), dtype=jnp.float32)

    y = jax.block_until_ready(lfe_pallas(x, w1, b1, w2, b2))
    y_ref = jax.block_until_ready(lfe_ref(x, w1, b1, w2, b2))

    # bf16 MXU operands (f32 accumulate) -> slightly looser tolerance than pure f32
    np.testing.assert_allclose(np.asarray(y), np.asarray(y_ref), rtol=2e-2, atol=2e-2)

    print("KERNEL_OK")
</pallas_src>

<mosaic_0001>
module attributes {stable_mosaic.version = 11 : i64} {
  func.func @_lfe_kernel(%arg0: i32, %arg1: memref<1x10x256xf32, #tpu.memory_space<vmem>>, %arg2: memref<20x10xbf16, #tpu.memory_space<vmem>>, %arg3: memref<20x1xf32, #tpu.memory_space<vmem>>, %arg4: memref<10x20xbf16, #tpu.memory_space<vmem>>, %arg5: memref<10x1xf32, #tpu.memory_space<vmem>>, %arg6: memref<4x256xf32, #tpu.memory_space<vmem>>, %arg7: memref<10x5xf32, #tpu.memory_space<vmem>>, %arg8: memref<20x5xf32, #tpu.memory_space<vmem>>, %arg9: memref<1x10x256xf32, #tpu.memory_space<vmem>>) attributes {dimension_semantics = [#tpu.dimension_semantics<parallel>], iteration_bounds = array<i64: 2>, scalar_prefetch = 0 : i64, scratch_operands = 0 : i64, tpu.core_type = #tpu.core_type<tc>, window_params = [{transform_indices = @transform_0, window_bounds = array<i64: 1, 10, 256>}, {pipeline_mode = #tpu.pipeline_mode<synchronous>, transform_indices = @transform_1, window_bounds = array<i64: 20, 10>}, {pipeline_mode = #tpu.pipeline_mode<synchronous>, transform_indices = @transform_2, window_bounds = array<i64: 20, 1>}, {pipeline_mode = #tpu.pipeline_mode<synchronous>, transform_indices = @transform_3, window_bounds = array<i64: 10, 20>}, {pipeline_mode = #tpu.pipeline_mode<synchronous>, transform_indices = @transform_4, window_bounds = array<i64: 10, 1>}, {pipeline_mode = #tpu.pipeline_mode<synchronous>, transform_indices = @transform_5, window_bounds = array<i64: 4, 256>}, {pipeline_mode = #tpu.pipeline_mode<synchronous>, transform_indices = @transform_6, window_bounds = array<i64: 10, 5>}, {pipeline_mode = #tpu.pipeline_mode<synchronous>, transform_indices = @transform_7, window_bounds = array<i64: 20, 5>}, {transform_indices = @transform_8, window_bounds = array<i64: 1, 10, 256>}]} {
    %c0 = arith.constant 0 : index
    %c0_0 = arith.constant 0 : index
    %c0_1 = arith.constant 0 : index
    %0 = vector.load %arg1[%c0, %c0_0, %c0_1] : memref<1x10x256xf32, #tpu.memory_space<vmem>>, vector<1x10x256xf32>
    %1 = vector.shape_cast %0 : vector<1x10x256xf32> to vector<10x256xf32>
    %c0_2 = arith.constant 0 : index
    %c0_3 = arith.constant 0 : index
    %2 = vector.load %arg6[%c0_2, %c0_3] : memref<4x256xf32, #tpu.memory_space<vmem>>, vector<4x256xf32>
    %c0_4 = arith.constant 0 : index
    %c0_5 = arith.constant 0 : index
    %3 = vector.load %arg7[%c0_4, %c0_5] : memref<10x5xf32, #tpu.memory_space<vmem>>, vector<10x5xf32>
    %c255_i32 = arith.constant 255 : i32
    %4 = tpu.dynamic_rotate %1 by %c255_i32 dim 1 : vector<10x256xf32>, i32 -> vector<10x256xf32>
    %5 = vector.extract_strided_slice %2 {offsets = [0, 0], sizes = [1, 256], strides = [1, 1]} : vector<4x256xf32> to vector<1x256xf32>
    %6 = vector.broadcast %5 : vector<1x256xf32> to vector<10x256xf32>
    %7 = arith.mulf %4, %6 : vector<10x256xf32>
    %8 = vector.extract_strided_slice %3 {offsets = [0, 0], sizes = [10, 1], strides = [1, 1]} : vector<10x5xf32> to vector<10x1xf32>
    %9 = vector.broadcast %8 : vector<10x1xf32> to vector<10x256xf32>
    %10 = arith.mulf %7, %9 : vector<10x256xf32>
    %c1_i32 = arith.constant 1 : i32
    %11 = tpu.dynamic_rotate %1 by %c1_i32 dim 1 : vector<10x256xf32>, i32 -> vector<10x256xf32>
    %12 = vector.extract_strided_slice %2 {offsets = [1, 0], sizes = [1, 256], strides = [1, 1]} : vector<4x256xf32> to vector<1x256xf32>
    %13 = vector.broadcast %12 : vector<1x256xf32> to vector<10x256xf32>
    %14 = arith.mulf %11, %13 : vector<10x256xf32>
    %15 = vector.extract_strided_slice %3 {offsets = [0, 1], sizes = [10, 1], strides = [1, 1]} : vector<10x5xf32> to vector<10x1xf32>
    %16 = vector.broadcast %15 : vector<10x1xf32> to vector<10x256xf32>
    %17 = arith.mulf %14, %16 : vector<10x256xf32>
    %18 = arith.addf %10, %17 : vector<10x256xf32>
    %c240_i32 = arith.constant 240 : i32
    %19 = tpu.dynamic_rotate %1 by %c240_i32 dim 1 : vector<10x256xf32>, i32 -> vector<10x256xf32>
    %20 = vector.extract_strided_slice %2 {offsets = [2, 0], sizes = [1, 256], strides = [1, 1]} : vector<4x256xf32> to vector<1x256xf32>
    %21 = vector.broadcast %20 : vector<1x256xf32> to vector<10x256xf32>
    %22 = arith.mulf %19, %21 : vector<10x256xf32>
    %23 = vector.extract_strided_slice %3 {offsets = [0, 2], sizes = [10, 1], strides = [1, 1]} : vector<10x5xf32> to vector<10x1xf32>
    %24 = vector.broadcast %23 : vector<10x1xf32> to vector<10x256xf32>
    %25 = arith.mulf %22, %24 : vector<10x256xf32>
    %26 = arith.addf %18, %25 : vector<10x256xf32>
    %c16_i32 = arith.constant 16 : i32
    %27 = tpu.dynamic_rotate %1 by %c16_i32 dim 1 : vector<10x256xf32>, i32 -> vector<10x256xf32>
    %28 = vector.extract_strided_slice %2 {offsets = [3, 0], sizes = [1, 256], strides = [1, 1]} : vector<4x256xf32> to vector<1x256xf32>
    %29 = vector.broadcast %28 : vector<1x256xf32> to vector<10x256xf32>
    %30 = arith.mulf %27, %29 : vector<10x256xf32>
    %31 = vector.extract_strided_slice %3 {offsets = [0, 3], sizes = [10, 1], strides = [1, 1]} : vector<10x5xf32> to vector<10x1xf32>
    %32 = vector.broadcast %31 : vector<10x1xf32> to vector<10x256xf32>
    %33 = arith.mulf %30, %32 : vector<10x256xf32>
    %34 = arith.addf %26, %33 : vector<10x256xf32>
    %35 = vector.extract_strided_slice %3 {offsets = [0, 4], sizes = [10, 1], strides = [1, 1]} : vector<10x5xf32> to vector<10x1xf32>
    %36 = vector.broadcast %35 : vector<10x1xf32> to vector<10x256xf32>
    %37 = arith.mulf %1, %36 : vector<10x256xf32>
    %38 = arith.addf %34, %37 : vector<10x256xf32>
    %c0_6 = arith.constant 0 : index
    %c0_7 = arith.constant 0 : index
    %39 = vector.load %arg2[%c0_6, %c0_7] : memref<20x10xbf16, #tpu.memory_space<vmem>>, vector<20x10xbf16>
    %40 = arith.truncf %38 : vector<10x256xf32> to vector<10x256xbf16>
    %cst = arith.constant dense<0.000000e+00> : vector<20x256xf32>
    %41 = tpu.matmul %39, %40, %cst {dimension_numbers = #tpu.dot_dimension_numbers<[1], [0], [0], [1], [0, 0, 1, 1], [], []>} : vector<20x10xbf16>, vector<10x256xbf16>, vector<20x256xf32> -> vector<20x256xf32>
    %c0_8 = arith.constant 0 : index
    %c0_9 = arith.constant 0 : index
    %42 = vector.load %arg3[%c0_8, %c0_9] : memref<20x1xf32, #tpu.memory_space<vmem>>, vector<20x1xf32>
    %43 = vector.broadcast %42 : vector<20x1xf32> to vector<20x256xf32>
    %44 = arith.addf %41, %43 : vector<20x256xf32>
    %cst_10 = arith.constant 0.000000e+00 : f32
    %45 = vector.broadcast %cst_10 : f32 to vector<20x256xf32>
    %46 = arith.maximumf %44, %45 : vector<20x256xf32>
    %c0_11 = arith.constant 0 : index
    %c0_12 = arith.constant 0 : index
    %47 = vector.load %arg8[%c0_11, %c0_12] : memref<20x5xf32, #tpu.memory_space<vmem>>, vector<20x5xf32>
    %c255_i32_13 = arith.constant 255 : i32
    %48 = tpu.dynamic_rotate %46 by %c255_i32_13 dim 1 : vector<20x256xf32>, i32 -> vector<20x256xf32>
    %49 = vector.extract_strided_slice %2 {offsets = [0, 0], sizes = [1, 256], strides = [1, 1]} : vector<4x256xf32> to vector<1x256xf32>
    %50 = vector.broadcast %49 : vector<1x256xf32> to vector<20x256xf32>
    %51 = arith.mulf %48, %50 : vector<20x256xf32>
    %52 = vector.extract_strided_slice %47 {offsets = [0, 0], sizes = [20, 1], strides = [1, 1]} : vector<20x5xf32> to vector<20x1xf32>
    %53 = vector.broadcast %52 : vector<20x1xf32> to vector<20x256xf32>
    %54 = arith.mulf %51, %53 : vector<20x256xf32>
    %c1_i32_14 = arith.constant 1 : i32
    %55 = tpu.dynamic_rotate %46 by %c1_i32_14 dim 1 : vector<20x256xf32>, i32 -> vector<20x256xf32>
    %56 = vector.extract_strided_slice %2 {offsets = [1, 0], sizes = [1, 256], strides = [1, 1]} : vector<4x256xf32> to vector<1x256xf32>
    %57 = vector.broadcast %56 : vector<1x256xf32> to vector<20x256xf32>
    %58 = arith.mulf %55, %57 : vector<20x256xf32>
    %59 = vector.extract_strided_slice %47 {offsets = [0, 1], sizes = [20, 1], strides = [1, 1]} : vector<20x5xf32> to vector<20x1xf32>
    %60 = vector.broadcast %59 : vector<20x1xf32> to vector<20x256xf32>
    %61 = arith.mulf %58, %60 : vector<20x256xf32>
    %62 = arith.addf %54, %61 : vector<20x256xf32>
    %c240_i32_15 = arith.constant 240 : i32
    %63 = tpu.dynamic_rotate %46 by %c240_i32_15 dim 1 : vector<20x256xf32>, i32 -> vector<20x256xf32>
    %64 = vector.extract_strided_slice %2 {offsets = [2, 0], sizes = [1, 256], strides = [1, 1]} : vector<4x256xf32> to vector<1x256xf32>
    %65 = vector.broadcast %64 : vector<1x256xf32> to vector<20x256xf32>
    %66 = arith.mulf %63, %65 : vector<20x256xf32>
    %67 = vector.extract_strided_slice %47 {offsets = [0, 2], sizes = [20, 1], strides = [1, 1]} : vector<20x5xf32> to vector<20x1xf32>
    %68 = vector.broadcast %67 : vector<20x1xf32> to vector<20x256xf32>
    %69 = arith.mulf %66, %68 : vector<20x256xf32>
    %70 = arith.addf %62, %69 : vector<20x256xf32>
    %c16_i32_16 = arith.constant 16 : i32
    %71 = tpu.dynamic_rotate %46 by %c16_i32_16 dim 1 : vector<20x256xf32>, i32 -> vector<20x256xf32>
    %72 = vector.extract_strided_slice %2 {offsets = [3, 0], sizes = [1, 256], strides = [1, 1]} : vector<4x256xf32> to vector<1x256xf32>
    %73 = vector.broadcast %72 : vector<1x256xf32> to vector<20x256xf32>
    %74 = arith.mulf %71, %73 : vector<20x256xf32>
    %75 = vector.extract_strided_slice %47 {offsets = [0, 3], sizes = [20, 1], strides = [1, 1]} : vector<20x5xf32> to vector<20x1xf32>
    %76 = vector.broadcast %75 : vector<20x1xf32> to vector<20x256xf32>
    %77 = arith.mulf %74, %76 : vector<20x256xf32>
    %78 = arith.addf %70, %77 : vector<20x256xf32>
    %79 = vector.extract_strided_slice %47 {offsets = [0, 4], sizes = [20, 1], strides = [1, 1]} : vector<20x5xf32> to vector<20x1xf32>
    %80 = vector.broadcast %79 : vector<20x1xf32> to vector<20x256xf32>
    %81 = arith.mulf %46, %80 : vector<20x256xf32>
    %82 = arith.addf %78, %81 : vector<20x256xf32>
    %c0_17 = arith.constant 0 : index
    %c0_18 = arith.constant 0 : index
    %83 = vector.load %arg4[%c0_17, %c0_18] : memref<10x20xbf16, #tpu.memory_space<vmem>>, vector<10x20xbf16>
    %84 = arith.truncf %82 : vector<20x256xf32> to vector<20x256xbf16>
    %cst_19 = arith.constant dense<0.000000e+00> : vector<10x256xf32>
    %85 = tpu.matmul %83, %84, %cst_19 {dimension_numbers = #tpu.dot_dimension_numbers<[1], [0], [0], [1], [0, 0, 1, 1], [], []>} : vector<10x20xbf16>, vector<20x256xbf16>, vector<10x256xf32> -> vector<10x256xf32>
    %c0_20 = arith.constant 0 : index
    %c0_21 = arith.constant 0 : index
    %86 = vector.load %arg5[%c0_20, %c0_21] : memref<10x1xf32, #tpu.memory_space<vmem>>, vector<10x1xf32>
    %87 = vector.broadcast %86 : vector<10x1xf32> to vector<10x256xf32>
    %88 = arith.addf %85, %87 : vector<10x256xf32>
    %c0_22 = arith.constant 0 : index
    %c0_23 = arith.constant 0 : index
    %c0_24 = arith.constant 0 : index
    %89 = vector.load %arg9[%c0_22, %c0_23, %c0_24] : memref<1x10x256xf32, #tpu.memory_space<vmem>>, vector<1x10x256xf32>
    %90 = vector.shape_cast %89 : vector<1x10x256xf32> to vector<10x256xf32>
    %91 = vector.shape_cast %88 : vector<10x256xf32> to vector<1x10x256xf32>
    tpu.vector_store %arg9[%c0_22, %c0_23, %c0_24], %91 {strides = array<i32>} : memref<1x10x256xf32, #tpu.memory_space<vmem>>, vector<1x10x256xf32>,
    return
  }
  func.func @transform_0(%arg0: i32) -> (i32, i32, i32) {
    %c0_i32 = arith.constant 0 : i32
    %c0_i32_0 = arith.constant 0 : i32
    %c0_i32_1 = arith.constant 0 : i32
    return %arg0, %c0_i32, %c0_i32_0 : i32, i32, i32
  }
  func.func @transform_1(%arg0: i32) -> (i32, i32) {
    %c0_i32 = arith.constant 0 : i32
    %c0_i32_0 = arith.constant 0 : i32
    %c0_i32_1 = arith.constant 0 : i32
    return %c0_i32, %c0_i32_0 : i32, i32
  }
  func.func @transform_2(%arg0: i32) -> (i32, i32) {
    %c0_i32 = arith.constant 0 : i32
    %c0_i32_0 = arith.constant 0 : i32
    %c0_i32_1 = arith.constant 0 : i32
    return %c0_i32, %c0_i32_0 : i32, i32
  }
  func.func @transform_3(%arg0: i32) -> (i32, i32) {
    %c0_i32 = arith.constant 0 : i32
    %c0_i32_0 = arith.constant 0 : i32
    %c0_i32_1 = arith.constant 0 : i32
    return %c0_i32, %c0_i32_0 : i32, i32
  }
  func.func @transform_4(%arg0: i32) -> (i32, i32) {
    %c0_i32 = arith.constant 0 : i32
    %c0_i32_0 = arith.constant 0 : i32
    %c0_i32_1 = arith.constant 0 : i32
    return %c0_i32, %c0_i32_0 : i32, i32
  }
  func.func @transform_5(%arg0: i32) -> (i32, i32) {
    %c0_i32 = arith.constant 0 : i32
    %c0_i32_0 = arith.constant 0 : i32
    %c0_i32_1 = arith.constant 0 : i32
    return %c0_i32, %c0_i32_0 : i32, i32
  }
  func.func @transform_6(%arg0: i32) -> (i32, i32) {
    %c0_i32 = arith.constant 0 : i32
    %c0_i32_0 = arith.constant 0 : i32
    %c0_i32_1 = arith.constant 0 : i32
    return %c0_i32, %c0_i32_0 : i32, i32
  }
  func.func @transform_7(%arg0: i32) -> (i32, i32) {
    %c0_i32 = arith.constant 0 : i32
    %c0_i32_0 = arith.constant 0 : i32
    %c0_i32_1 = arith.constant 0 : i32
    return %c0_i32, %c0_i32_0 : i32, i32
  }
  func.func @transform_8(%arg0: i32) -> (i32, i32, i32) {
    %c0_i32 = arith.constant 0 : i32
    %c0_i32_0 = arith.constant 0 : i32
    %c0_i32_1 = arith.constant 0 : i32
    return %arg0, %c0_i32, %c0_i32_0 : i32, i32, i32
  }
}

</mosaic_0001>

<llo_original>
// kernel: tpu_custom_call.1
$region0: #{tpu_custom_call.1}
  #allocation0 [shape = 'u32[]', space=smem, size = 0x4, offset = 0x4, fixed_abs, tag = 'smem constant byte address 0x4 - core index']
  #allocation1 [shape = 'u32[144,128]{1,0:T(1,128)}', space=vmem, size = 0x12000, scoped, tag = 'internal scratch']
  %s0 = inlined_call_operand.vmem [shape: f32[2,10,256], index: 0, kind: input, shape index: {}]
  %s1 = inlined_call_operand.vmem [shape: bf16[20,10], index: 1, kind: input, shape index: {}]
  %s2 = inlined_call_operand.vmem [shape: f32[20,1], index: 2, kind: input, shape index: {}]
  %s3 = inlined_call_operand.vmem [shape: bf16[10,20], index: 3, kind: input, shape index: {}]
  %s4 = inlined_call_operand.vmem [shape: f32[10,1], index: 4, kind: input, shape index: {}]
  %s5 = inlined_call_operand.vmem [shape: f32[4,256], index: 5, kind: input, shape index: {}]
  %s6 = inlined_call_operand.vmem [shape: f32[10,5], index: 6, kind: input, shape index: {}]
  %s7 = inlined_call_operand.vmem [shape: f32[20,5], index: 7, kind: input, shape index: {}]
  %s8 = inlined_call_operand.vmem [shape: f32[2,10,256], index: 8, kind: output, shape index: {}]
  %s9 = sld [smem:[#allocation0]]
  $region65: #{tpu_custom_call.1} parent=0
    _
  %s11 = ssub.s32 1, %s9
  %s12 = scalar_select 0, %s11, %s9
  loop: start=0, step=1, limit=4
  $region2: #{tpu_custom_call.1} parent=0 // loop_pre_header
    _
  $region3: #{tpu_custom_call.1} parent=0 // loop_header
    %s14 = sphi 0, %s18
    %p15 = scmp.ge.s32.totalorder %s14, 4
    %s24 = sphi 0, %s26
    %s27 = sphi 0, %s24
    %s28 = sphi 0, %s27
    %s44 = sphi 0, %s28
    %s48 = sphi 0, %s48
    %s50 = sphi 0, %s48
    %s51 = sphi 0, %s50
    %s65 = sphi 0, %s51
    %s69 = sphi 0, %s69
    %s71 = sphi 0, %s69
    %s72 = sphi 0, %s71
    %s86 = sphi 0, %s72
    %s90 = sphi 0, %s90
    %s92 = sphi 0, %s90
    %s93 = sphi 0, %s92
    %s107 = sphi 0, %s93
    %s111 = sphi 0, %s111
    %s113 = sphi 0, %s111
    %s114 = sphi 0, %s113
    %s128 = sphi 0, %s114
    %s132 = sphi 0, %s132
    %s134 = sphi 0, %s132
    %s135 = sphi 0, %s134
    %s149 = sphi 0, %s135
    %s153 = sphi 0, %s153
    %s155 = sphi 0, %s153
    %s156 = sphi 0, %s155
    %s170 = sphi 0, %s156
    %s174 = sphi 0, %s174
    %s176 = sphi 0, %s174
    %s177 = sphi 0, %s176
    %s191 = sphi 0, %s177
    %s197 = sphi 0, %s199
    %s200 = sphi 0, %s197
    %s201 = sphi 0, %s200
    %s217 = sphi 0, %s201
  $region4: #{tpu_custom_call.1} parent=0 // loop_header_branch
    %17 = sbr.rel (%p15) target = $region8
  $region5: #{tpu_custom_call.1} parent=0 // loop_body
    %s19 = ssub.s32 %s14, 1
    %s20 = ssub.s32 %s14, 2
    %s21 = sadd.s32 %s14, 1
    %s22 = ssub.s32 %s14, %s21
    %p23 = scmp.eq.s32.totalorder %s22, 0
    %s25 = sadd.s32 %s24, 1
    %s26 = scalar_select %p23, %s24, %s25
    %p29 = pneg %p23
    %p30 = scmp.eq.s32.totalorder %s14, 1
    %p31 = por %p29, %p30
    %p32 = scmp.ne.s32.totalorder %s24, %s27
    %p33 = scmp.eq.s32.totalorder %s14, 0
    %p34 = por %p32, %p33
    %p35 = scmp.ne.s32.totalorder %s24, %s27
    %p36 = scmp.eq.s32.totalorder %s19, 1
    %p37 = por %p35, %p36
    %p38 = scmp.ne.s32.totalorder %s27, %s28
    %p39 = scmp.eq.s32.totalorder %s19, 0
    %p40 = por %p38, %p39
    %p41 = scmp.ne.s32.totalorder %s27, %s28
    %p42 = scmp.eq.s32.totalorder %s20, 1
    %p43 = por %p41, %p42
    %p45 = scmp.ne.s32.totalorder %s28, %s44
    %p46 = scmp.eq.s32.totalorder %s20, 0
    %p47 = por %p45, %p46
    %s49 = sadd.s32 %s48, 1
    %p52 = scmp.eq.s32.totalorder %s14, 1
    %p53 = scmp.ne.s32.totalorder %s48, %s50
    %p54 = scmp.eq.s32.totalorder %s14, 0
    %p55 = por %p53, %p54
    %p56 = scmp.ne.s32.totalorder %s48, %s50
    %p57 = scmp.eq.s32.totalorder %s19, 1
    %p58 = por %p56, %p57
    %p59 = scmp.ne.s32.totalorder %s50, %s51
    %p60 = scmp.eq.s32.totalorder %s19, 0
    %p61 = por %p59, %p60
    %p62 = scmp.ne.s32.totalorder %s50, %s51
    %p63 = scmp.eq.s32.totalorder %s20, 1
    %p64 = por %p62, %p63
    %p66 = scmp.ne.s32.totalorder %s51, %s65
    %p67 = scmp.eq.s32.totalorder %s20, 0
    %p68 = por %p66, %p67
    %s70 = sadd.s32 %s69, 1
    %p73 = scmp.eq.s32.totalorder %s14, 1
    %p74 = scmp.ne.s32.totalorder %s69, %s71
    %p75 = scmp.eq.s32.totalorder %s14, 0
    %p76 = por %p74, %p75
    %p77 = scmp.ne.s32.totalorder %s69, %s71
    %p78 = scmp.eq.s32.totalorder %s19, 1
    %p79 = por %p77, %p78
    %p80 = scmp.ne.s32.totalorder %s71, %s72
    %p81 = scmp.eq.s32.totalorder %s19, 0
    %p82 = por %p80, %p81
    %p83 = scmp.ne.s32.totalorder %s71, %s72
    %p84 = scmp.eq.s32.totalorder %s20, 1
    %p85 = por %p83, %p84
    %p87 = scmp.ne.s32.totalorder %s72, %s86
    %p88 = scmp.eq.s32.totalorder %s20, 0
    %p89 = por %p87, %p88
    %s91 = sadd.s32 %s90, 1
    %p94 = scmp.eq.s32.totalorder %s14, 1
    %p95 = scmp.ne.s32.totalorder %s90, %s92
    %p96 = scmp.eq.s32.totalorder %s14, 0
    %p97 = por %p95, %p96
    %p98 = scmp.ne.s32.totalorder %s90, %s92
    %p99 = scmp.eq.s32.totalorder %s19, 1
    %p100 = por %p98, %p99
    %p101 = scmp.ne.s32.totalorder %s92, %s93
    %p102 = scmp.eq.s32.totalorder %s19, 0
    %p103 = por %p101, %p102
    %p104 = scmp.ne.s32.totalorder %s92, %s93
    %p105 = scmp.eq.s32.totalorder %s20, 1
    %p106 = por %p104, %p105
    %p108 = scmp.ne.s32.totalorder %s93, %s107
    %p109 = scmp.eq.s32.totalorder %s20, 0
    %p110 = por %p108, %p109
    %s112 = sadd.s32 %s111, 1
    %p115 = scmp.eq.s32.totalorder %s14, 1
    %p116 = scmp.ne.s32.totalorder %s111, %s113
    %p117 = scmp.eq.s32.totalorder %s14, 0
    %p118 = por %p116, %p117
    %p119 = scmp.ne.s32.totalorder %s111, %s113
    %p120 = scmp.eq.s32.totalorder %s19, 1
    %p121 = por %p119, %p120
    %p122 = scmp.ne.s32.totalorder %s113, %s114
    %p123 = scmp.eq.s32.totalorder %s19, 0
    %p124 = por %p122, %p123
    %p125 = scmp.ne.s32.totalorder %s113, %s114
    %p126 = scmp.eq.s32.totalorder %s20, 1
    %p127 = por %p125, %p126
    %p129 = scmp.ne.s32.totalorder %s114, %s128
    %p130 = scmp.eq.s32.totalorder %s20, 0
    %p131 = por %p129, %p130
    %s133 = sadd.s32 %s132, 1
    %p136 = scmp.eq.s32.totalorder %s14, 1
    %p137 = scmp.ne.s32.totalorder %s132, %s134
    %p138 = scmp.eq.s32.totalorder %s14, 0
    %p139 = por %p137, %p138
    %p140 = scmp.ne.s32.totalorder %s132, %s134
    %p141 = scmp.eq.s32.totalorder %s19, 1
    %p142 = por %p140, %p141
    %p143 = scmp.ne.s32.totalorder %s134, %s135
    %p144 = scmp.eq.s32.totalorder %s19, 0
    %p145 = por %p143, %p144
    %p146 = scmp.ne.s32.totalorder %s134, %s135
    %p147 = scmp.eq.s32.totalorder %s20, 1
    %p148 = por %p146, %p147
    %p150 = scmp.ne.s32.totalorder %s135, %s149
    %p151 = scmp.eq.s32.totalorder %s20, 0
    %p152 = por %p150, %p151
    %s154 = sadd.s32 %s153, 1
    %p157 = scmp.eq.s32.totalorder %s14, 1
    %p158 = scmp.ne.s32.totalorder %s153, %s155
    %p159 = scmp.eq.s32.totalorder %s14, 0
    %p160 = por %p158, %p159
    %p161 = scmp.ne.s32.totalorder %s153, %s155
    %p162 = scmp.eq.s32.totalorder %s19, 1
    %p163 = por %p161, %p162
    %p164 = scmp.ne.s32.totalorder %s155, %s156
    %p165 = scmp.eq.s32.totalorder %s19, 0
    %p166 = por %p164, %p165
    %p167 = scmp.ne.s32.totalorder %s155, %s156
    %p168 = scmp.eq.s32.totalorder %s20, 1
    %p169 = por %p167, %p168
    %p171 = scmp.ne.s32.totalorder %s156, %s170
    %p172 = scmp.eq.s32.totalorder %s20, 0
    %p173 = por %p171, %p172
    %s175 = sadd.s32 %s174, 1
    %p178 = scmp.eq.s32.totalorder %s14, 1
    %p179 = scmp.ne.s32.totalorder %s174, %s176
    %p180 = scmp.eq.s32.totalorder %s14, 0
    %p181 = por %p179, %p180
    %p182 = scmp.ne.s32.totalorder %s174, %s176
    %p183 = scmp.eq.s32.totalorder %s19, 1
    %p184 = por %p182, %p183
    %p185 = scmp.ne.s32.totalorder %s176, %s177
    %p186 = scmp.eq.s32.totalorder %s19, 0
    %p187 = por %p185, %p186
    %p188 = scmp.ne.s32.totalorder %s176, %s177
    %p189 = scmp.eq.s32.totalorder %s20, 1
    %p190 = por %p188, %p189
    %p192 = scmp.ne.s32.totalorder %s177, %s191
    %p193 = scmp.eq.s32.totalorder %s20, 0
    %p194 = por %p192, %p193
    %s195 = ssub.s32 %s14, %s21
    %p196 = scmp.eq.s32.totalorder %s195, 0
    %s198 = sadd.s32 %s197, 1
    %s199 = scalar_select %p196, %s197, %s198
    %p202 = pneg %p196
    %p203 = scmp.eq.s32.totalorder %s14, 1
    %p204 = por %p202, %p203
    %p205 = scmp.ne.s32.totalorder %s197, %s200
    %p206 = scmp.eq.s32.totalorder %s14, 0
    %p207 = por %p205, %p206
    %p208 = scmp.ne.s32.totalorder %s197, %s200
    %p209 = scmp.eq.s32.totalorder %s19, 1
    %p210 = por %p208, %p209
    %p211 = scmp.ne.s32.totalorder %s200, %s201
    %p212 = scmp.eq.s32.totalorder %s19, 0
    %p213 = por %p211, %p212
    %p214 = scmp.ne.s32.totalorder %s200, %s201
    %p215 = scmp.eq.s32.totalorder %s20, 1
    %p216 = por %p214, %p215
    %p218 = scmp.ne.s32.totalorder %s201, %s217
    %p219 = scmp.eq.s32.totalorder %s20, 0
    %p220 = por %p218, %p219
    %p221 = scmp.le.s32.totalorder 1, %s14
    %p222 = scmp.lt.s32.totalorder %s14, 3
    %p223 = pnand %p221, %p222
    %p224 = pneg %p223
    // Predicated region
    $region9: #{tpu_custom_call.1} parent=5 // pred_check
      _
    $region10: #{tpu_custom_call.1} parent=5 // pred_check_branch
      %226 = sbr.rel (%p223) target = $region12
    $region11: #{tpu_custom_call.1} parent=5 // pred_region
      %s227 = ssub.s32 %s14, 1
      // Predicated region
      $region13: #{tpu_custom_call.1} parent=11 // pred_check
        %p228 = pneg %p61
      $region14: #{tpu_custom_call.1} parent=11 // pred_check_branch
        %230 = sbr.rel (%p228) target = $region16
      $region15: #{tpu_custom_call.1} parent=11 // pred_region
        _
      $region16: #{tpu_custom_call.1} parent=11 // pred_fallthru
        _
      // Predicated region
      $region17: #{tpu_custom_call.1} parent=11 // pred_check
        %p231 = pneg %p82
      $region18: #{tpu_custom_call.1} parent=11 // pred_check_branch
        %233 = sbr.rel (%p231) target = $region20
      $region19: #{tpu_custom_call.1} parent=11 // pred_region
        _
      $region20: #{tpu_custom_call.1} parent=11 // pred_fallthru
        _
      // Predicated region
      $region21: #{tpu_custom_call.1} parent=11 // pred_check
        %p234 = pneg %p103
      $region22: #{tpu_custom_call.1} parent=11 // pred_check_branch
        %236 = sbr.rel (%p234) target = $region24
      $region23: #{tpu_custom_call.1} parent=11 // pred_region
        _
      $region24: #{tpu_custom_call.1} parent=11 // pred_fallthru
        _
      // Predicated region
      $region25: #{tpu_custom_call.1} parent=11 // pred_check
        %p237 = pneg %p124
      $region26: #{tpu_custom_call.1} parent=11 // pred_check_branch
        %239 = sbr.rel (%p237) target = $region28
      $region27: #{tpu_custom_call.1} parent=11 // pred_region
        _
      $region28: #{tpu_custom_call.1} parent=11 // pred_fallthru
        _
      // Predicated region
      $region29: #{tpu_custom_call.1} parent=11 // pred_check
        %p240 = pneg %p145
      $region30: #{tpu_custom_call.1} parent=11 // pred_check_branch
        %242 = sbr.rel (%p240) target = $region32
      $region31: #{tpu_custom_call.1} parent=11 // pred_region
        _
      $region32: #{tpu_custom_call.1} parent=11 // pred_fallthru
        _
      // Predicated region
      $region33: #{tpu_custom_call.1} parent=11 // pred_check
        %p243 = pneg %p166
      $region34: #{tpu_custom_call.1} parent=11 // pred_check_branch
        %245 = sbr.rel (%p243) target = $region36
      $region35: #{tpu_custom_call.1} parent=11 // pred_region
        _
      $region36: #{tpu_custom_call.1} parent=11 // pred_fallthru
        _
      // Predicated region
      $region37: #{tpu_custom_call.1} parent=11 // pred_check
        %p246 = pneg %p187
      $region38: #{tpu_custom_call.1} parent=11 // pred_check_branch
        %248 = sbr.rel (%p246) target = $region40
      $region39: #{tpu_custom_call.1} parent=11 // pred_region
        _
      $region40: #{tpu_custom_call.1} parent=11 // pred_fallthru
        _
    $region12: #{tpu_custom_call.1} parent=5 // pred_fallthru
      _
    %p249 = scmp.lt.s32.totalorder %s14, 2
    // Predicated region
    $region41: #{tpu_custom_call.1} parent=5 // pred_check
      %p250 = pneg %p249
    $region42: #{tpu_custom_call.1} parent=5 // pred_check_branch
      %252 = sbr.rel (%p250) target = $region44
    $region43: #{tpu_custom_call.1} parent=5 // pred_region
      // Predicated region
      $region45: #{tpu_custom_call.1} parent=43 // pred_check
        %p253 = pneg %p34
      $region46: #{tpu_custom_call.1} parent=43 // pred_check_branch
        %255 = sbr.rel (%p253) target = $region48
      $region47: #{tpu_custom_call.1} parent=43 // pred_region
        %p256 = scmp.lt.s32.totalorder %s14, 1
        %s257 = scalar_select %p256, %s14, 1
        %s258 = smul.addr %s257, 4
        %s259 = smul.addr %s258, 8
        %s260 = scalar_lea.vmem %s0, %s259
      $region48: #{tpu_custom_call.1} parent=43 // pred_fallthru
        _
    $region44: #{tpu_custom_call.1} parent=5 // pred_fallthru
      _
    %p261 = scmp.le.s32.totalorder 1, %s14
    %p262 = scmp.lt.s32.totalorder %s14, 3
    %p263 = pnand %p261, %p262
    %p264 = pneg %p263
    // Predicated region
    $region49: #{tpu_custom_call.1} parent=5 // pred_check
      _
    $region50: #{tpu_custom_call.1} parent=5 // pred_check_branch
      %266 = sbr.rel (%p263) target = $region52
    $region51: #{tpu_custom_call.1} parent=5 // pred_region
      %s267 = ssub.s32 %s14, 1
      %p268 = scmp.lt.s32.totalorder %s19, 1
      %s269 = scalar_select %p268, %s19, 1
      %s270 = smul.addr %s269, 4
      %s271 = smul.addr %s270, 8
      %s272 = scalar_lea.vmem %s0, %s271
      %p273 = pneg %p40
      %p274 = pneg %p37
      %p275 = pneg %p61
      %p276 = pneg %p58
      %p277 = pneg %p82
      %p278 = pneg %p79
      %p279 = pneg %p103
      %p280 = pneg %p100
      %p281 = pneg %p124
      %p282 = pneg %p121
      %p283 = pneg %p145
      %p284 = pneg %p142
      %p285 = pneg %p166
      %p286 = pneg %p163
      %p287 = pneg %p187
      %p288 = pneg %p184
      %p289 = pneg %p213
      %p290 = pneg %p210
      %p291 = scmp.lt.s32.totalorder %s19, 1
      %s292 = scalar_select %p291, %s19, 1
      %s293 = smul.addr %s292, 4
      %s294 = smul.addr %s293, 8
      %s295 = scalar_lea.vmem %s8, %s294
      %p296 = scmp.lt.s32.totalorder %s19, 1
      %s297 = scalar_select %p296, %s19, 1
      %s298 = smul.addr %s297, 4
      %s299 = smul.addr %s298, 8
      %s300 = scalar_lea.vmem %s0, %s299
      %p301 = scmp.lt.s32.totalorder %s19, 1
      %s302 = scalar_select %p301, %s19, 1
      %s303 = smul.addr %s302, 4
      %s304 = smul.addr %s303, 8
      %s305 = scalar_lea.vmem %s8, %s304
      %v307 = vld [vmem:[%s300] sm:$0xff]
      %v308 = vld [vmem:[%s300 + $0x8] sm:$0xff]
      %v309 = vld [vmem:[%s300 + $0x10] sm:$0x3]
      %v310 = vld [vmem:[%s300 + $0x18] sm:$0x3]
      %v311 = vld [vmem:[%s5] sm:$0xff]
      %v312 = vld [vmem:[%s6] sm:$0xff]
      %v313 = vld [vmem:[%s6 + $0x8] sm:$0x3]
      %314 = vrot.lane.b32.xlu0 %v307, 127
      %v315 = vpop.permute.xlu0 %314
      %316 = vrot.lane.b32.xlu0 %v309, 127
      %v317 = vpop.permute.xlu0 %316
      %318 = vrot.lane.b32.xlu0 %v308, 127
      %v319 = vpop.permute.xlu0 %318
      %320 = vrot.lane.b32.xlu0 %v310, 127
      %v321 = vpop.permute.xlu0 %320
      %v322 = vlaneseq
      %v323 = vand.u32 %v322, 127
      %vm324 = vcmp.lt.s32.totalorder %v323, 127
      %v325 = vsel %vm324, %v315, %v319
      %v326 = vsel %vm324, %v317, %v321
      %v327 = vsel %vm324, %v319, %v315
      %v328 = vsel %vm324, %v321, %v317
      %v330 = vlaneseq
      %v331 = vshrl.u32 %v330, 7
      %v332 = vsub.s32 0, %v331
      %v333 = vrot.slane %v311, %v332
      %v334 = vlaneseq
      %v335 = vshrl.u32 %v334, 7
      %v336 = vsub.s32 4, %v335
      %v337 = vrot.slane %v311, %v336
      %v340 = vlaneseq
      %v341 = vshrl.u32 %v340, 7
      %v342 = vsub.s32 0, %v341
      %v343 = vrot.slane %v333, %v342
      %v344 = vlaneseq
      %v345 = vshrl.u32 %v344, 7
      %v346 = vsub.s32 0, %v345
      %v347 = vrot.slane %v337, %v346
      %v348 = vmul.f32 %v325, %v343
      %v349 = vmul.f32 %v327, %v347
      %v350 = vmul.f32 %v326, %v343
      %v351 = vmul.f32 %v328, %v347
      %353 = vset.pattern.permute.xlu0 0
      %354 = vperm.xlu0 %353, %v312
      %v355 = vpop.permute.xlu0 %354
      %358 = vset.pattern.permute.xlu0 0
      %359 = vperm.xlu0 %358, %v313
      %v360 = vpop.permute.xlu0 %359
      %v362 = vmul.f32 %v348, %v355
      %v363 = vmul.f32 %v349, %v355
      %v364 = vmul.f32 %v350, %v360
      %v365 = vmul.f32 %v351, %v360
      %366 = vrot.lane.b32.xlu0 %v307, 1
      %v367 = vpop.permute.xlu0 %366
      %368 = vrot.lane.b32.xlu0 %v309, 1
      %v369 = vpop.permute.xlu0 %368
      %370 = vrot.lane.b32.xlu0 %v308, 1
      %v371 = vpop.permute.xlu0 %370
      %372 = vrot.lane.b32.xlu0 %v310, 1
      %v373 = vpop.permute.xlu0 %372
      %vm374 = vcmp.lt.s32.totalorder %v323, 1
      %v375 = vsel %vm374, %v367, %v371
      %v376 = vsel %vm374, %v369, %v373
      %v377 = vsel %vm374, %v371, %v367
      %v378 = vsel %vm374, %v373, %v369
      %v379 = vlaneseq
      %v380 = vshrl.u32 %v379, 7
      %v381 = vsub.s32 1, %v380
      %v382 = vrot.slane %v311, %v381
      %v383 = vlaneseq
      %v384 = vshrl.u32 %v383, 7
      %v385 = vsub.s32 5, %v384
      %v386 = vrot.slane %v311, %v385
      %v389 = vlaneseq
      %v390 = vshrl.u32 %v389, 7
      %v391 = vsub.s32 1, %v390
      %v392 = vrot.slane %v382, %v391
      %v393 = vlaneseq
      %v394 = vshrl.u32 %v393, 7
      %v395 = vsub.s32 1, %v394
      %v396 = vrot.slane %v386, %v395
      %v397 = vmul.f32 %v377, %v392
      %v398 = vmul.f32 %v375, %v396
      %v399 = vmul.f32 %v378, %v392
      %v400 = vmul.f32 %v376, %v396
      %401 = vset.pattern.permute.xlu0 1
      %402 = vperm.xlu0 %401, %v312
      %v403 = vpop.permute.xlu0 %402
      %405 = vset.pattern.permute.xlu0 1
      %406 = vperm.xlu0 %405, %v313
      %v407 = vpop.permute.xlu0 %406
      %v409 = vmul.f32 %v397, %v403
      %v410 = vmul.f32 %v398, %v403
      %v411 = vmul.f32 %v399, %v407
      %v412 = vmul.f32 %v400, %v407
      %v413 = vadd.f32 %v362, %v409
      %v414 = vadd.f32 %v363, %v410
      %v415 = vadd.f32 %v364, %v411
      %v416 = vadd.f32 %v365, %v412
      %417 = vrot.lane.b32.xlu0 %v307, 112
      %v418 = vpop.permute.xlu0 %417
      %419 = vrot.lane.b32.xlu0 %v309, 112
      %v420 = vpop.permute.xlu0 %419
      %421 = vrot.lane.b32.xlu0 %v308, 112
      %v422 = vpop.permute.xlu0 %421
      %423 = vrot.lane.b32.xlu0 %v310, 112
      %v424 = vpop.permute.xlu0 %423
      %vm425 = vcmp.lt.s32.totalorder %v323, 112
      %v426 = vsel %vm425, %v418, %v422
      %v427 = vsel %vm425, %v420, %v424
      %v428 = vsel %vm425, %v422, %v418
      %v429 = vsel %vm425, %v424, %v420
      %v430 = vlaneseq
      %v431 = vshrl.u32 %v430, 7
      %v432 = vsub.s32 2, %v431
      %v433 = vrot.slane %v311, %v432
      %v434 = vlaneseq
      %v435 = vshrl.u32 %v434, 7
      %v436 = vsub.s32 6, %v435
      %v437 = vrot.slane %v311, %v436
      %v440 = vlaneseq
      %v441 = vshrl.u32 %v440, 7
      %v442 = vsub.s32 2, %v441
      %v443 = vrot.slane %v433, %v442
      %v444 = vlaneseq
      %v445 = vshrl.u32 %v444, 7
      %v446 = vsub.s32 2, %v445
      %v447 = vrot.slane %v437, %v446
      %v448 = vmul.f32 %v426, %v443
      %v449 = vmul.f32 %v428, %v447
      %v450 = vmul.f32 %v427, %v443
      %v451 = vmul.f32 %v429, %v447
      %452 = vset.pattern.permute.xlu0 2
      %453 = vperm.xlu0 %452, %v312
      %v454 = vpop.permute.xlu0 %453
      %456 = vset.pattern.permute.xlu0 2
      %457 = vperm.xlu0 %456, %v313
      %v458 = vpop.permute.xlu0 %457
      %v460 = vmul.f32 %v448, %v454
      %v461 = vmul.f32 %v449, %v454
      %v462 = vmul.f32 %v450, %v458
      %v463 = vmul.f32 %v451, %v458
      %v464 = vadd.f32 %v413, %v460
      %v465 = vadd.f32 %v414, %v461
      %v466 = vadd.f32 %v415, %v462
      %v467 = vadd.f32 %v416, %v463
      %468 = vrot.lane.b32.xlu0 %v307, 16
      %v469 = vpop.permute.xlu0 %468
      %470 = vrot.lane.b32.xlu0 %v309, 16
      %v471 = vpop.permute.xlu0 %470
      %472 = vrot.lane.b32.xlu0 %v308, 16
      %v473 = vpop.permute.xlu0 %472
      %474 = vrot.lane.b32.xlu0 %v310, 16
      %v475 = vpop.permute.xlu0 %474
      %vm476 = vcmp.lt.s32.totalorder %v323, 16
      %v477 = vsel %vm476, %v469, %v473
      %v478 = vsel %vm476, %v471, %v475
      %v479 = vsel %vm476, %v473, %v469
      %v480 = vsel %vm476, %v475, %v471
      %v481 = vlaneseq
      %v482 = vshrl.u32 %v481, 7
      %v483 = vsub.s32 3, %v482
      %v484 = vrot.slane %v311, %v483
      %v485 = vlaneseq
      %v486 = vshrl.u32 %v485, 7
      %v487 = vsub.s32 7, %v486
      %v488 = vrot.slane %v311, %v487
      %v491 = vlaneseq
      %v492 = vshrl.u32 %v491, 7
      %v493 = vsub.s32 3, %v492
      %v494 = vrot.slane %v484, %v493
      %v495 = vlaneseq
      %v496 = vshrl.u32 %v495, 7
      %v497 = vsub.s32 3, %v496
      %v498 = vrot.slane %v488, %v497
      %v499 = vmul.f32 %v479, %v494
      %v500 = vmul.f32 %v477, %v498
      %v501 = vmul.f32 %v480, %v494
      %v502 = vmul.f32 %v478, %v498
      %503 = vset.pattern.permute.xlu0 3
      %504 = vperm.xlu0 %503, %v312
      %v505 = vpop.permute.xlu0 %504
      %507 = vset.pattern.permute.xlu0 3
      %508 = vperm.xlu0 %507, %v313
      %v509 = vpop.permute.xlu0 %508
      %v511 = vmul.f32 %v499, %v505
      %v512 = vmul.f32 %v500, %v505
      %v513 = vmul.f32 %v501, %v509
      %v514 = vmul.f32 %v502, %v509
      %v515 = vadd.f32 %v464, %v511
      %v516 = vadd.f32 %v465, %v512
      %v517 = vadd.f32 %v466, %v513
      %v518 = vadd.f32 %v467, %v514
      %519 = vset.pattern.permute.xlu0 4
      %520 = vperm.xlu0 %519, %v312
      %v521 = vpop.permute.xlu0 %520
      %523 = vset.pattern.permute.xlu0 4
      %524 = vperm.xlu0 %523, %v313
      %v525 = vpop.permute.xlu0 %524
      %v527 = vmul.f32 %v307, %v521
      %v528 = vmul.f32 %v308, %v521
      %v529 = vmul.f32 %v309, %v525
      %v530 = vmul.f32 %v310, %v525
      %v531 = vadd.f32 %v515, %v527
      %v532 = vadd.f32 %v516, %v528
      %v533 = vadd.f32 %v517, %v529
      %v534 = vadd.f32 %v518, %v530
      %v535 = vld [vmem:[%s1] sm:$0xf]
      %v536 = vld [vmem:[%s1 + $0x4] sm:$0xf]
      %v537 = vld [vmem:[%s1 + $0x8] sm:$0x3]
      %v538 = vpack.c.bf16 %v533, %v531
      %v539 = vpack.c.bf16 %v534, %v532
      %v540 = vld [vmem:[%s2] sm:$0xff]
      %v541 = vld [vmem:[%s2 + $0x8] sm:$0xff]
      %v542 = vld [vmem:[%s2 + $0x10] sm:$0xf]
      %544 = vset.pattern.permute.xlu0 0
      %545 = vperm.xlu0 %544, %v540
      %v546 = vpop.permute.xlu0 %545
      %549 = vset.pattern.permute.xlu0 0
      %550 = vperm.xlu0 %549, %v541
      %v551 = vpop.permute.xlu0 %550
      %554 = vset.pattern.permute.xlu0 0
      %555 = vperm.xlu0 %554, %v542
      %v556 = vpop.permute.xlu0 %555
      %v561 = vunpack.c.l.b16 %v535
      %v562 = vunpack.c.l.b16 %v536
      %v563 = vunpack.c.l.b16 %v537
      %v564 = vpack.c.b16 %v562, %v561
      %v565 = vpack.c.b16 %v563, %v563
      %vm566 = vcmask 80896
      %v568 = vsel %vm566, %v564, 0
      %v571 = vsel %vm566, %v565, 0
      %vm573 = vcmask 1044480
      %v575 = vsel %vm573, %v538, 0
      %v578 = vsel %vm573, %v539, 0
      %580 = vmatprep.subr.bf16.mxu0 %v578
      %581 = vmatpush1.bf16.msra.mxu0 %v575
      %582 = vmatprep.subr.bf16.mxu0 0
      %583 = vmatpush1.bf16.msra.mxu0 0
      %584 = vmatprep.subr.bf16.mxu0 0
      %585 = vmatpush1.bf16.msra.mxu0 0
      %586 = vmatprep.subr.bf16.mxu0 0
      %587 = vmatpush1.bf16.msra.mxu0 0
      %588 = vmatprep.subr.bf16.mxu0 0
      %589 = vmatpush1.bf16.msra.mxu0 0
      %590 = vmatprep.subr.bf16.mxu0 0
      %591 = vmatpush1.bf16.msra.mxu0 0
      %592 = vmatprep.subr.bf16.mxu0 0
      %593 = vmatpush1.bf16.msra.mxu0 0
      %594 = vmatprep.subr.bf16.mxu0 0
      %595 = vmatpush1.bf16.msra.mxu0 0
      %596 = vmatprep.subr.bf16.mxu0 0
      %597 = vmatpush1.bf16.msra.mxu0 0
      %598 = vmatprep.subr.bf16.mxu0 0
      %599 = vmatpush1.bf16.msra.mxu0 0
      %600 = vmatprep.subr.bf16.mxu0 0
      %601 = vmatpush1.bf16.msra.mxu0 0
      %602 = vmatprep.subr.bf16.mxu0 0
      %603 = vmatpush1.bf16.msra.mxu0 0
      %604 = vmatprep.subr.bf16.mxu0 0
      %605 = vmatpush1.bf16.msra.mxu0 0
      %606 = vmatprep.subr.bf16.mxu0 0
      %607 = vmatpush1.bf16.msra.mxu0 0
      %608 = vmatprep.subr.bf16.mxu0 0
      %609 = vmatpush1.bf16.msra.mxu0 0
      %610 = vmatprep.subr.bf16.mxu0 0
      %611 = vmatpush1.bf16.msra.mxu0 0
      %612 = vmatprep.mubr.bf16.mxu0 0
      %613 = vmatmul.mubr.bf16.gmra.mrb[0].mxu0 %v568
      %v614 = vpop.f32.mrb[0].mxu0
      %v615 = vadd.f32 %v546, %v614
      %v616 = vpop.f32.mrb[0].mxu0
      %v617 = vadd.f32 %v546, %v616
      %v618 = vpop.f32.mrb[0].mxu0
      %v619 = vadd.f32 %v551, %v618
      %v620 = vpop.f32.mrb[0].mxu0
      %v621 = vadd.f32 %v551, %v620
      %622 = vmatprep.mubr.bf16.mxu0 0
      %623 = vmatmul.mubr.bf16.gmra.mrb[0].mxu0 %v571
      %v624 = vpop.f32.mrb[0].mxu0
      %v625 = vadd.f32 %v556, %v624
      %v626 = vpop.f32.mrb[0].mxu0
      %v627 = vadd.f32 %v556, %v626
      %v628 = vpop.f32.mrb[0].mxu0
      %v629 = vpop.f32.mrb[0].mxu0
      %630 = vdwg.mxu0
      %v631 = vmax.f32 %v615, 0.0
      %v632 = vmax.f32 %v617, 0.0
      %v633 = vmax.f32 %v619, 0.0
      %v634 = vmax.f32 %v621, 0.0
      %v635 = vmax.f32 %v625, 0.0
      %v636 = vmax.f32 %v627, 0.0
      %v637 = vld [vmem:[%s7] sm:$0xff]
      %v638 = vld [vmem:[%s7 + $0x8] sm:$0xff]
      %v639 = vld [vmem:[%s7 + $0x10] sm:$0xf]
      %640 = vrot.lane.b32.xlu0 %v631, 127
      %v641 = vpop.permute.xlu0 %640
      %642 = vrot.lane.b32.xlu0 %v633, 127
      %v643 = vpop.permute.xlu0 %642
      %644 = vrot.lane.b32.xlu0 %v635, 127
      %v645 = vpop.permute.xlu0 %644
      %646 = vrot.lane.b32.xlu0 %v632, 127
      %v647 = vpop.permute.xlu0 %646
      %648 = vrot.lane.b32.xlu0 %v634, 127
      %v649 = vpop.permute.xlu0 %648
      %650 = vrot.lane.b32.xlu0 %v636, 127
      %v651 = vpop.permute.xlu0 %650
      %v652 = vsel %vm324, %v641, %v647
      %v653 = vsel %vm324, %v643, %v649
      %v654 = vsel %vm324, %v645, %v651
      %v655 = vsel %vm324, %v647, %v641
      %v656 = vsel %vm324, %v649, %v643
      %v657 = vsel %vm324, %v651, %v645
      %v658 = vmul.f32 %v652, %v343
      %v659 = vmul.f32 %v655, %v347
      %v660 = vmul.f32 %v653, %v343
      %v661 = vmul.f32 %v656, %v347
      %v662 = vmul.f32 %v654, %v343
      %v663 = vmul.f32 %v657, %v347
      %665 = vset.pattern.permute.xlu0 0
      %666 = vperm.xlu0 %665, %v637
      %v667 = vpop.permute.xlu0 %666
      %670 = vset.pattern.permute.xlu0 0
      %671 = vperm.xlu0 %670, %v638
      %v672 = vpop.permute.xlu0 %671
      %675 = vset.pattern.permute.xlu0 0
      %676 = vperm.xlu0 %675, %v639
      %v677 = vpop.permute.xlu0 %676
      %v679 = vmul.f32 %v658, %v667
      %v680 = vmul.f32 %v659, %v667
      %v681 = vmul.f32 %v660, %v672
      %v682 = vmul.f32 %v661, %v672
      %v683 = vmul.f32 %v662, %v677
      %v684 = vmul.f32 %v663, %v677
      %685 = vrot.lane.b32.xlu0 %v631, 1
      %v686 = vpop.permute.xlu0 %685
      %687 = vrot.lane.b32.xlu0 %v633, 1
      %v688 = vpop.permute.xlu0 %687
      %689 = vrot.lane.b32.xlu0 %v635, 1
      %v690 = vpop.permute.xlu0 %689
      %691 = vrot.lane.b32.xlu0 %v632, 1
      %v692 = vpop.permute.xlu0 %691
      %693 = vrot.lane.b32.xlu0 %v634, 1
      %v694 = vpop.permute.xlu0 %693
      %695 = vrot.lane.b32.xlu0 %v636, 1
      %v696 = vpop.permute.xlu0 %695
      %v697 = vsel %vm374, %v686, %v692
      %v698 = vsel %vm374, %v688, %v694
      %v699 = vsel %vm374, %v690, %v696
      %v700 = vsel %vm374, %v692, %v686
      %v701 = vsel %vm374, %v694, %v688
      %v702 = vsel %vm374, %v696, %v690
      %v703 = vmul.f32 %v700, %v392
      %v704 = vmul.f32 %v697, %v396
      %v705 = vmul.f32 %v701, %v392
      %v706 = vmul.f32 %v698, %v396
      %v707 = vmul.f32 %v702, %v392
      %v708 = vmul.f32 %v699, %v396
      %709 = vset.pattern.permute.xlu0 1
      %710 = vperm.xlu0 %709, %v637
      %v711 = vpop.permute.xlu0 %710
      %713 = vset.pattern.permute.xlu0 1
      %714 = vperm.xlu0 %713, %v638
      %v715 = vpop.permute.xlu0 %714
      %717 = vset.pattern.permute.xlu0 1
      %718 = vperm.xlu0 %717, %v639
      %v719 = vpop.permute.xlu0 %718
      %v721 = vmul.f32 %v703, %v711
      %v722 = vmul.f32 %v704, %v711
      %v723 = vmul.f32 %v705, %v715
      %v724 = vmul.f32 %v706, %v715
      %v725 = vmul.f32 %v707, %v719
      %v726 = vmul.f32 %v708, %v719
      %v727 = vadd.f32 %v679, %v721
      %v728 = vadd.f32 %v680, %v722
      %v729 = vadd.f32 %v681, %v723
      %v730 = vadd.f32 %v682, %v724
      %v731 = vadd.f32 %v683, %v725
      %v732 = vadd.f32 %v684, %v726
      %733 = vrot.lane.b32.xlu0 %v631, 112
      %v734 = vpop.permute.xlu0 %733
      %735 = vrot.lane.b32.xlu0 %v633, 112
      %v736 = vpop.permute.xlu0 %735
      %737 = vrot.lane.b32.xlu0 %v635, 112
      %v738 = vpop.permute.xlu0 %737
      %739 = vrot.lane.b32.xlu0 %v632, 112
      %v740 = vpop.permute.xlu0 %739
      %741 = vrot.lane.b32.xlu0 %v634, 112
      %v742 = vpop.permute.xlu0 %741
      %743 = vrot.lane.b32.xlu0 %v636, 112
      %v744 = vpop.permute.xlu0 %743
      %v745 = vsel %vm425, %v734, %v740
      %v746 = vsel %vm425, %v736, %v742
      %v747 = vsel %vm425, %v738, %v744
      %v748 = vsel %vm425, %v740, %v734
      %v749 = vsel %vm425, %v742, %v736
      %v750 = vsel %vm425, %v744, %v738
      %v751 = vmul.f32 %v745, %v443
      %v752 = vmul.f32 %v748, %v447
      %v753 = vmul.f32 %v746, %v443
      %v754 = vmul.f32 %v749, %v447
      %v755 = vmul.f32 %v747, %v443
      %v756 = vmul.f32 %v750, %v447
      %757 = vset.pattern.permute.xlu0 2
      %758 = vperm.xlu0 %757, %v637
      %v759 = vpop.permute.xlu0 %758
      %761 = vset.pattern.permute.xlu0 2
      %762 = vperm.xlu0 %761, %v638
      %v763 = vpop.permute.xlu0 %762
      %765 = vset.pattern.permute.xlu0 2
      %766 = vperm.xlu0 %765, %v639
      %v767 = vpop.permute.xlu0 %766
      %v769 = vmul.f32 %v751, %v759
      %v770 = vmul.f32 %v752, %v759
      %v771 = vmul.f32 %v753, %v763
      %v772 = vmul.f32 %v754, %v763
      %v773 = vmul.f32 %v755, %v767
      %v774 = vmul.f32 %v756, %v767
      %v775 = vadd.f32 %v727, %v769
      %v776 = vadd.f32 %v728, %v770
      %v777 = vadd.f32 %v729, %v771
      %v778 = vadd.f32 %v730, %v772
      %v779 = vadd.f32 %v731, %v773
      %v780 = vadd.f32 %v732, %v774
      %781 = vrot.lane.b32.xlu0 %v631, 16
      %v782 = vpop.permute.xlu0 %781
      %783 = vrot.lane.b32.xlu0 %v633, 16
      %v784 = vpop.permute.xlu0 %783
      %785 = vrot.lane.b32.xlu0 %v635, 16
      %v786 = vpop.permute.xlu0 %785
      %787 = vrot.lane.b32.xlu0 %v632, 16
      %v788 = vpop.permute.xlu0 %787
      %789 = vrot.lane.b32.xlu0 %v634, 16
      %v790 = vpop.permute.xlu0 %789
      %791 = vrot.lane.b32.xlu0 %v636, 16
      %v792 = vpop.permute.xlu0 %791
      %v793 = vsel %vm476, %v782, %v788
      %v794 = vsel %vm476, %v784, %v790
      %v795 = vsel %vm476, %v786, %v792
      %v796 = vsel %vm476, %v788, %v782
      %v797 = vsel %vm476, %v790, %v784
      %v798 = vsel %vm476, %v792, %v786
      %v799 = vmul.f32 %v796, %v494
      %v800 = vmul.f32 %v793, %v498
      %v801 = vmul.f32 %v797, %v494
      %v802 = vmul.f32 %v794, %v498
      %v803 = vmul.f32 %v798, %v494
      %v804 = vmul.f32 %v795, %v498
      %805 = vset.pattern.permute.xlu0 3
      %806 = vperm.xlu0 %805, %v637
      %v807 = vpop.permute.xlu0 %806
      %809 = vset.pattern.permute.xlu0 3
      %810 = vperm.xlu0 %809, %v638
      %v811 = vpop.permute.xlu0 %810
      %813 = vset.pattern.permute.xlu0 3
      %814 = vperm.xlu0 %813, %v639
      %v815 = vpop.permute.xlu0 %814
      %v817 = vmul.f32 %v799, %v807
      %v818 = vmul.f32 %v800, %v807
      %v819 = vmul.f32 %v801, %v811
      %v820 = vmul.f32 %v802, %v811
      %v821 = vmul.f32 %v803, %v815
      %v822 = vmul.f32 %v804, %v815
      %v823 = vadd.f32 %v775, %v817
      %v824 = vadd.f32 %v776, %v818
      %v825 = vadd.f32 %v777, %v819
      %v826 = vadd.f32 %v778, %v820
      %v827 = vadd.f32 %v779, %v821
      %v828 = vadd.f32 %v780, %v822
      %829 = vset.pattern.permute.xlu0 4
      %830 = vperm.xlu0 %829, %v637
      %v831 = vpop.permute.xlu0 %830
      %833 = vset.pattern.permute.xlu0 4
      %834 = vperm.xlu0 %833, %v638
      %v835 = vpop.permute.xlu0 %834
      %837 = vset.pattern.permute.xlu0 4
      %838 = vperm.xlu0 %837, %v639
      %v839 = vpop.permute.xlu0 %838
      %v841 = vmul.f32 %v631, %v831
      %v842 = vmul.f32 %v632, %v831
      %v843 = vmul.f32 %v633, %v835
      %v844 = vmul.f32 %v634, %v835
      %v845 = vmul.f32 %v635, %v839
      %v846 = vmul.f32 %v636, %v839
      %v847 = vadd.f32 %v823, %v841
      %v848 = vadd.f32 %v824, %v842
      %v849 = vadd.f32 %v825, %v843
      %v850 = vadd.f32 %v826, %v844
      %v851 = vadd.f32 %v827, %v845
      %v852 = vadd.f32 %v828, %v846
      %v853 = vld [vmem:[%s3] sm:$0xf]
      %v854 = vld [vmem:[%s3 + $0x4] sm:$0x1]
      %v855 = vpack.c.bf16 %v849, %v847
      %v856 = vpack.c.bf16 %v850, %v848
      %v857 = vpack.c.bf16 %v851, %v851
      %v858 = vpack.c.bf16 %v852, %v852
      %v859 = vld [vmem:[%s4] sm:$0xff]
      %v860 = vld [vmem:[%s4 + $0x8] sm:$0x3]
      %862 = vset.pattern.permute.xlu0 0
      %863 = vperm.xlu0 %862, %v859
      %v864 = vpop.permute.xlu0 %863
      %867 = vset.pattern.permute.xlu0 0
      %868 = vperm.xlu0 %867, %v860
      %v869 = vpop.permute.xlu0 %868
      %v873 = vunpack.c.l.b16 %v853
      %v874 = vunpack.c.l.b16 %v854
      %v875 = vpack.c.b16 %v874, %v873
      %vm876 = vcmask 162816
      %v878 = vsel %vm876, %v875, 0
      %vm880 = vcmask 1041408
      %v882 = vsel %vm880, %v857, 0
      %v885 = vsel %vm880, %v858, 0
      %887 = vmatprep.subr.bf16.mxu0 %v856
      %888 = vmatpush1.bf16.msra.mxu0 %v855
      %889 = vmatprep.subr.bf16.mxu0 %v885
      %890 = vmatpush1.bf16.msra.mxu0 %v882
      %891 = vmatprep.subr.bf16.mxu0 0
      %892 = vmatpush1.bf16.msra.mxu0 0
      %893 = vmatprep.subr.bf16.mxu0 0
      %894 = vmatpush1.bf16.msra.mxu0 0
      %895 = vmatprep.subr.bf16.mxu0 0
      %896 = vmatpush1.bf16.msra.mxu0 0
      %897 = vmatprep.subr.bf16.mxu0 0
      %898 = vmatpush1.bf16.msra.mxu0 0
      %899 = vmatprep.subr.bf16.mxu0 0
      %900 = vmatpush1.bf16.msra.mxu0 0
      %901 = vmatprep.subr.bf16.mxu0 0
      %902 = vmatpush1.bf16.msra.mxu0 0
      %903 = vmatprep.subr.bf16.mxu0 0
      %904 = vmatpush1.bf16.msra.mxu0 0
      %905 = vmatprep.subr.bf16.mxu0 0
      %906 = vmatpush1.bf16.msra.mxu0 0
      %907 = vmatprep.subr.bf16.mxu0 0
      %908 = vmatpush1.bf16.msra.mxu0 0
      %909 = vmatprep.subr.bf16.mxu0 0
      %910 = vmatpush1.bf16.msra.mxu0 0
      %911 = vmatprep.subr.bf16.mxu0 0
      %912 = vmatpush1.bf16.msra.mxu0 0
      %913 = vmatprep.subr.bf16.mxu0 0
      %914 = vmatpush1.bf16.msra.mxu0 0
      %915 = vmatprep.subr.bf16.mxu0 0
      %916 = vmatpush1.bf16.msra.mxu0 0
      %917 = vmatprep.subr.bf16.mxu0 0
      %918 = vmatpush1.bf16.msra.mxu0 0
      %919 = vmatprep.mubr.bf16.mxu0 0
      %920 = vmatmul.mubr.bf16.gmra.mrb[0].mxu0 %v878
      %v921 = vpop.f32.mrb[0].mxu0
      %v922 = vadd.f32 %v864, %v921
      %v923 = vpop.f32.mrb[0].mxu0
      %v924 = vadd.f32 %v864, %v923
      %v925 = vpop.f32.mrb[0].mxu0
      %v926 = vadd.f32 %v869, %v925
      %v927 = vpop.f32.mrb[0].mxu0
      %v928 = vadd.f32 %v869, %v927
      %929 = vdwg.mxu0
      %930 = vst [vmem:[%s305] sm:$0xff] %v922
      %931 = vst [vmem:[%s305 + $0x8] sm:$0xff] %v924
      %932 = vst [vmem:[%s305 + $0x10] sm:$0x3] %v926
      %933 = vst [vmem:[%s305 + $0x18] sm:$0x3] %v928
      %p934 = scmp.lt.s32.totalorder %s19, 1
      %s935 = scalar_select %p934, %s19, 1
      %s936 = smul.addr %s935, 4
      %s937 = smul.addr %s936, 8
      %s938 = scalar_lea.vmem %s8, %s937
      // Predicated region
      $region53: #{tpu_custom_call.1} parent=51 // pred_check
        %p939 = pneg %p210
      $region54: #{tpu_custom_call.1} parent=51 // pred_check_branch
        %941 = sbr.rel (%p939) target = $region56
      $region55: #{tpu_custom_call.1} parent=51 // pred_region
        _
      $region56: #{tpu_custom_call.1} parent=51 // pred_fallthru
        _
    $region52: #{tpu_custom_call.1} parent=5 // pred_fallthru
      _
    %p942 = scmp.le.s32.totalorder 2, %s14
    // Predicated region
    $region57: #{tpu_custom_call.1} parent=5 // pred_check
      %p943 = pneg %p942
    $region58: #{tpu_custom_call.1} parent=5 // pred_check_branch
      %945 = sbr.rel (%p943) target = $region60
    $region59: #{tpu_custom_call.1} parent=5 // pred_region
      %s946 = ssub.s32 %s14, 2
      // Predicated region
      $region61: #{tpu_custom_call.1} parent=59 // pred_check
        %p947 = pneg %p216
      $region62: #{tpu_custom_call.1} parent=59 // pred_check_branch
        %949 = sbr.rel (%p947) target = $region64
      $region63: #{tpu_custom_call.1} parent=59 // pred_region
        %p950 = scmp.lt.s32.totalorder %s20, 1
        %s951 = scalar_select %p950, %s20, 1
        %s952 = smul.addr %s951, 4
        %s953 = smul.addr %s952, 8
        %s954 = scalar_lea.vmem %s8, %s953
      $region64: #{tpu_custom_call.1} parent=59 // pred_fallthru
        _
    $region60: #{tpu_custom_call.1} parent=5 // pred_fallthru
      _
  $region6: #{tpu_custom_call.1} parent=0 // loop_footer
    %s18 = sadd.s32 1, %s14
  $region7: #{tpu_custom_call.1} parent=0 // loop_footer_branch
    %13 = sbr.rel target = $region3
  $region8: #{tpu_custom_call.1} parent=0 // loop_exit
    _

</llo_original>
